<compile_context>
chip_gen: v6e
topology: v6e:2x2x1
jax: 0.10.0
libtpu: 0.0.40
codegen_flags: <defaults>
</compile_context>

<pallas_src>
import jax
import jax.numpy as jnp
from jax.experimental import pallas as pl
from jax.experimental.pallas import tpu as pltpu

NUM_FEATURES = 16   # `num_features` global in the reference module
HIDDEN1 = 16
HIDDEN2 = 64
HIDDEN3 = 64
OUT_DIM = 32
BN_EPS = 1e-5
CPAD = 128          # lane-dense channel padding


# ---------------------------------------------------------------------------
# Pallas kernel: full fused forward pass
# ---------------------------------------------------------------------------
def fused_gnn_kernel(a_ref, x_ref, w1_ref, b1_ref, w2_ref, b2_ref,
                     w3_ref, b3_ref, wo_ref, bo_ref, o_ref):
    """h1 = relu((A @ X ) @ W1' + b1')
       h2 = relu((A @ h1) @ W2' + b2')      (dropout: eval-mode identity)
       h3 = relu((A @ h2) @ W3' + b3')
       out = max_over_nodes(h3) @ Wo + bo    (all weights BN-folded, zero-padded to 128)
    """
    a = a_ref[...]

    # Layer 1 (C_in=16 < padded C_out=128 -> contract with A first: fewer MACs)
    ax = jnp.dot(a, x_ref[...], preferred_element_type=jnp.float32)
    h = jnp.maximum(
        jnp.dot(ax, w1_ref[...], preferred_element_type=jnp.float32) + b1_ref[...], 0.0)

    # Layer 2
    ah = jnp.dot(a, h, preferred_element_type=jnp.float32)
    h = jnp.maximum(
        jnp.dot(ah, w2_ref[...], preferred_element_type=jnp.float32) + b2_ref[...], 0.0)
    # TODO(synk): training-mode Dropout(0.5) (stochastic mask) not implemented; eval identity.

    # Layer 3
    ah = jnp.dot(a, h, preferred_element_type=jnp.float32)
    h = jnp.maximum(
        jnp.dot(ah, w3_ref[...], preferred_element_type=jnp.float32) + b3_ref[...], 0.0)

    # global_max_pool(batch=None) -> (1, 128)  (XLU sublane reduce), then Linear epilogue
    pooled = jnp.max(h, axis=0, keepdims=True)
    o_ref[...] = jnp.dot(pooled, wo_ref[...],
                         preferred_element_type=jnp.float32) + bo_ref[...]


_VMEM = pl.BlockSpec(memory_space=pltpu.MemorySpace.VMEM)


# ---------------------------------------------------------------------------
# Wrapper glue (all under jit): adjacency, BN folding, lane padding, kernel call
# ---------------------------------------------------------------------------
def normalized_adjacency(edge_index, n):
    """A_hat = D^{-1/2} (A + remaining self loops) D^{-1/2}, PyG gcn_norm semantics
    (duplicate edges summed; self loops only added to nodes lacking one)."""
    src, dst = edge_index[0], edge_index[1]
    a = jnp.zeros((n, n), jnp.float32).at[dst, src].add(1.0)   # messages src -> dst (summed)
    diag = jnp.diagonal(a)
    a = a + jnp.diag(jnp.where(diag > 0, 0.0, 1.0))            # add_remaining_self_loops
    deg = a.sum(axis=1)
    dinv = jnp.where(deg > 0, jax.lax.rsqrt(deg), 0.0)
    return dinv[:, None] * a * dinv[None, :]


def _fold_bn(w, b, gamma, beta, mean, var):
    """Fold eval-mode BatchNorm into the preceding affine: relu(BN(A(XW)+b)) == relu(A(XW')+b')."""
    s = gamma * jax.lax.rsqrt(var + BN_EPS)        # (1, C_out)
    return w * s, b * s + beta - mean * s


def _pad2(a, rows, cols):
    out = jnp.zeros((rows, cols), jnp.float32)
    return out.at[:a.shape[0], :a.shape[1]].set(a)


@jax.jit
def my_gnn_forward(x, edge_index, params):
    n = x.shape[0]
    a_hat = normalized_adjacency(edge_index, n)

    g1, be1, m1, v1 = params["bn1"]
    w1, b1 = _fold_bn(params["w1"], params["b1"], g1, be1, m1, v1)
    g2, be2, m2, v2 = params["bn2"]
    w2, b2 = _fold_bn(params["w2"], params["b2"], g2, be2, m2, v2)
    g3, be3, m3, v3 = params["bn3"]
    w3, b3 = _fold_bn(params["w3"], params["b3"], g3, be3, m3, v3)

    # Zero-pad every channel dim to 128 lanes (padded channels stay exactly 0 through
    # relu and contribute nothing downstream; final result sliced back to 32).
    w1p = _pad2(w1, NUM_FEATURES, CPAD)
    b1p = _pad2(b1, 1, CPAD)
    w2p = _pad2(w2, CPAD, CPAD)
    b2p = _pad2(b2, 1, CPAD)
    w3p = _pad2(w3, CPAD, CPAD)
    b3p = _pad2(b3, 1, CPAD)
    wop = _pad2(params["wo"], CPAD, CPAD)
    bop = _pad2(params["bo"], 1, CPAD)

    out_pad = pl.pallas_call(
        fused_gnn_kernel,
        out_shape=jax.ShapeDtypeStruct((1, CPAD), jnp.float32),
        in_specs=[_VMEM] * 10,
        out_specs=_VMEM,
    )(a_hat, x, w1p, b1p, w2p, b2p, w3p, b3p, wop, bop)

    return out_pad[:, :OUT_DIM]


# ---------------------------------------------------------------------------
# Parameter construction (plain JAX, mirrors the torch module's shapes)
# ---------------------------------------------------------------------------
def init_params(key):
    ks = jax.random.split(key, 12)

    def dense(k, cin, cout):
        return 0.1 * jax.random.normal(k, (cin, cout), jnp.float32)

    def bn(k, c):
        kg, kb = jax.random.split(k)
        gamma = 1.0 + 0.05 * jax.random.normal(kg, (1, c), jnp.float32)
        beta = 0.05 * jax.random.normal(kb, (1, c), jnp.float32)
        mean = jnp.zeros((1, c), jnp.float32)     # running_mean init
        var = jnp.ones((1, c), jnp.float32)       # running_var init
        return gamma, beta, mean, var

    return {
        "w1": dense(ks[0], NUM_FEATURES, HIDDEN1),
        "b1": 0.01 * jax.random.normal(ks[1], (1, HIDDEN1), jnp.float32),
        "bn1": bn(ks[2], HIDDEN1),
        "w2": dense(ks[3], HIDDEN1, HIDDEN2),
        "b2": 0.01 * jax.random.normal(ks[4], (1, HIDDEN2), jnp.float32),
        "bn2": bn(ks[5], HIDDEN2),
        "w3": dense(ks[6], HIDDEN2, HIDDEN3),
        "b3": 0.01 * jax.random.normal(ks[7], (1, HIDDEN3), jnp.float32),
        "bn3": bn(ks[8], HIDDEN3),
        "wo": dense(ks[9], HIDDEN3, OUT_DIM),     # torch Linear weight is (out,in); stored transposed
        "bo": 0.01 * jax.random.normal(ks[10], (1, OUT_DIM), jnp.float32),
    }


# ---------------------------------------------------------------------------
if __name__ == "__main__":
    key = jax.random.PRNGKey(0)
    k_x, k_e, k_p = jax.random.split(key, 3)

    N = 32       # nodes (multiple of 8 -> sublane aligned)
    E = 64       # directed random edges (plus a ring for connectivity)

    x = jax.random.normal(k_x, (N, NUM_FEATURES), jnp.float32)

    # deterministic edge_index [2, E + 2N]: ring edges both directions + random edges
    ring_src = jnp.arange(N, dtype=jnp.int32)
    ring_dst = (ring_src + 1) % N
    rand_edges = jax.random.randint(k_e, (2, E), 0, N, jnp.int32)
    edge_index = jnp.concatenate(
        [jnp.stack([ring_src, ring_dst]),
         jnp.stack([ring_dst, ring_src]),
         rand_edges], axis=1)

    params = init_params(k_p)

    out = my_gnn_forward(x, edge_index, params)
    out = jax.block_until_ready(out)
    assert out.shape == (1, OUT_DIM), out.shape
    print("KERNEL_OK")
</pallas_src>

<mosaic_0001>
module attributes {stable_mosaic.version = 11 : i64} {
  func.func private @main(%arg0: i32) attributes {dimension_semantics = [#tpu.dimension_semantics<core_parallel>], iteration_bounds = array<i64: 2>, tpu.core_type = #tpu.core_type<sc_scalar_subcore>, window_params = []} {
    return
  }
}

module attributes {stable_mosaic.version = 11 : i64} {
  func.func private @main(%arg0: i32) attributes {dimension_semantics = [#tpu.dimension_semantics<core_parallel>], iteration_bounds = array<i64: 2>, tpu.core_type = #tpu.core_type<sc_scalar_subcore>, window_params = []} {
    return
  }
}

module attributes {stable_mosaic.version = 11 : i64} {
  func.func @fused_gnn_kernel(%arg0: memref<32x32xf32, #tpu.memory_space<vmem>>, %arg1: memref<32x16xf32, #tpu.memory_space<vmem>>, %arg2: memref<16x128xf32, #tpu.memory_space<vmem>>, %arg3: memref<1x128xf32, #tpu.memory_space<vmem>>, %arg4: memref<128x128xf32, #tpu.memory_space<vmem>>, %arg5: memref<1x128xf32, #tpu.memory_space<vmem>>, %arg6: memref<128x128xf32, #tpu.memory_space<vmem>>, %arg7: memref<1x128xf32, #tpu.memory_space<vmem>>, %arg8: memref<128x128xf32, #tpu.memory_space<vmem>>, %arg9: memref<1x128xf32, #tpu.memory_space<vmem>>, %arg10: memref<1x128xf32, #tpu.memory_space<vmem>>) attributes {dimension_semantics = [], scalar_prefetch = 0 : i64, scratch_operands = 0 : i64, tpu.core_type = #tpu.core_type<tc>} {
    %c0 = arith.constant 0 : index
    %c0_0 = arith.constant 0 : index
    %0 = vector.load %arg0[%c0, %c0_0] : memref<32x32xf32, #tpu.memory_space<vmem>>, vector<32x32xf32>
    %c0_1 = arith.constant 0 : index
    %c0_2 = arith.constant 0 : index
    %1 = vector.load %arg1[%c0_1, %c0_2] : memref<32x16xf32, #tpu.memory_space<vmem>>, vector<32x16xf32>
    %cst = arith.constant dense<0.000000e+00> : vector<32x16xf32>
    %2 = tpu.matmul %0, %1, %cst {dimension_numbers = #tpu.dot_dimension_numbers<[1], [0], [0], [1], [0, 0, 1, 1], [], []>} : vector<32x32xf32>, vector<32x16xf32>, vector<32x16xf32> -> vector<32x16xf32>
    %c0_3 = arith.constant 0 : index
    %c0_4 = arith.constant 0 : index
    %3 = vector.load %arg2[%c0_3, %c0_4] : memref<16x128xf32, #tpu.memory_space<vmem>>, vector<16x128xf32>
    %cst_5 = arith.constant dense<0.000000e+00> : vector<32x128xf32>
    %4 = tpu.matmul %2, %3, %cst_5 {dimension_numbers = #tpu.dot_dimension_numbers<[1], [0], [0], [1], [0, 0, 1, 1], [], []>} : vector<32x16xf32>, vector<16x128xf32>, vector<32x128xf32> -> vector<32x128xf32>
    %c0_6 = arith.constant 0 : index
    %c0_7 = arith.constant 0 : index
    %5 = vector.load %arg3[%c0_6, %c0_7] : memref<1x128xf32, #tpu.memory_space<vmem>>, vector<1x128xf32>
    %6 = vector.broadcast %5 : vector<1x128xf32> to vector<32x128xf32>
    %7 = arith.addf %4, %6 : vector<32x128xf32>
    %cst_8 = arith.constant 0.000000e+00 : f32
    %8 = vector.broadcast %cst_8 : f32 to vector<32x128xf32>
    %9 = arith.maximumf %7, %8 : vector<32x128xf32>
    %cst_9 = arith.constant dense<0.000000e+00> : vector<32x128xf32>
    %10 = tpu.matmul %0, %9, %cst_9 {dimension_numbers = #tpu.dot_dimension_numbers<[1], [0], [0], [1], [0, 0, 1, 1], [], []>} : vector<32x32xf32>, vector<32x128xf32>, vector<32x128xf32> -> vector<32x128xf32>
    %c0_10 = arith.constant 0 : index
    %c0_11 = arith.constant 0 : index
    %11 = vector.load %arg4[%c0_10, %c0_11] : memref<128x128xf32, #tpu.memory_space<vmem>>, vector<128x128xf32>
    %cst_12 = arith.constant dense<0.000000e+00> : vector<32x128xf32>
    %12 = tpu.matmul %10, %11, %cst_12 {dimension_numbers = #tpu.dot_dimension_numbers<[1], [0], [0], [1], [0, 0, 1, 1], [], []>} : vector<32x128xf32>, vector<128x128xf32>, vector<32x128xf32> -> vector<32x128xf32>
    %c0_13 = arith.constant 0 : index
    %c0_14 = arith.constant 0 : index
    %13 = vector.load %arg5[%c0_13, %c0_14] : memref<1x128xf32, #tpu.memory_space<vmem>>, vector<1x128xf32>
    %14 = vector.broadcast %13 : vector<1x128xf32> to vector<32x128xf32>
    %15 = arith.addf %12, %14 : vector<32x128xf32>
    %cst_15 = arith.constant 0.000000e+00 : f32
    %16 = vector.broadcast %cst_15 : f32 to vector<32x128xf32>
    %17 = arith.maximumf %15, %16 : vector<32x128xf32>
    %cst_16 = arith.constant dense<0.000000e+00> : vector<32x128xf32>
    %18 = tpu.matmul %0, %17, %cst_16 {dimension_numbers = #tpu.dot_dimension_numbers<[1], [0], [0], [1], [0, 0, 1, 1], [], []>} : vector<32x32xf32>, vector<32x128xf32>, vector<32x128xf32> -> vector<32x128xf32>
    %c0_17 = arith.constant 0 : index
    %c0_18 = arith.constant 0 : index
    %19 = vector.load %arg6[%c0_17, %c0_18] : memref<128x128xf32, #tpu.memory_space<vmem>>, vector<128x128xf32>
    %cst_19 = arith.constant dense<0.000000e+00> : vector<32x128xf32>
    %20 = tpu.matmul %18, %19, %cst_19 {dimension_numbers = #tpu.dot_dimension_numbers<[1], [0], [0], [1], [0, 0, 1, 1], [], []>} : vector<32x128xf32>, vector<128x128xf32>, vector<32x128xf32> -> vector<32x128xf32>
    %c0_20 = arith.constant 0 : index
    %c0_21 = arith.constant 0 : index
    %21 = vector.load %arg7[%c0_20, %c0_21] : memref<1x128xf32, #tpu.memory_space<vmem>>, vector<1x128xf32>
    %22 = vector.broadcast %21 : vector<1x128xf32> to vector<32x128xf32>
    %23 = arith.addf %20, %22 : vector<32x128xf32>
    %cst_22 = arith.constant 0.000000e+00 : f32
    %24 = vector.broadcast %cst_22 : f32 to vector<32x128xf32>
    %25 = arith.maximumf %23, %24 : vector<32x128xf32>
    %cst_23 = arith.constant dense<0xFF800000> : vector<128xf32>
    %26 = vector.multi_reduction <maximumf>, %25, %cst_23 [0] : vector<32x128xf32> to vector<128xf32>
    %27 = vector.shape_cast %26 : vector<128xf32> to vector<1x128xf32>
    %c0_24 = arith.constant 0 : index
    %c0_25 = arith.constant 0 : index
    %28 = vector.load %arg8[%c0_24, %c0_25] : memref<128x128xf32, #tpu.memory_space<vmem>>, vector<128x128xf32>
    %cst_26 = arith.constant dense<0.000000e+00> : vector<1x128xf32>
    %29 = tpu.matmul %27, %28, %cst_26 {dimension_numbers = #tpu.dot_dimension_numbers<[1], [0], [0], [1], [0, 0, 1, 1], [], []>} : vector<1x128xf32>, vector<128x128xf32>, vector<1x128xf32> -> vector<1x128xf32>
    %c0_27 = arith.constant 0 : index
    %c0_28 = arith.constant 0 : index
    %30 = vector.load %arg9[%c0_27, %c0_28] : memref<1x128xf32, #tpu.memory_space<vmem>>, vector<1x128xf32>
    %31 = arith.addf %29, %30 : vector<1x128xf32>
    %c0_29 = arith.constant 0 : index
    %c0_30 = arith.constant 0 : index
    %32 = vector.load %arg10[%c0_29, %c0_30] : memref<1x128xf32, #tpu.memory_space<vmem>>, vector<1x128xf32>
    tpu.vector_store %arg10[%c0_29, %c0_30], %31 {strides = array<i32>} : memref<1x128xf32, #tpu.memory_space<vmem>>, vector<1x128xf32>,
    return
  }
}

</mosaic_0001>

<llo_original>
// kernel: my_gnn_forward.1
$region0: #{my_gnn_forward.1}
  #allocation0 [shape = 'u32[]', space=smem, size = 0x4, offset = 0x4, fixed_abs, tag = 'smem constant byte address 0x4 - core index']
  #allocation1 [shape = 'u32[144,128]{1,0:T(1,128)}', space=vmem, size = 0x12000, scoped, tag = 'internal scratch']
  %s0 = inlined_call_operand.vmem [shape: f32[32,32], index: 0, kind: input, shape index: {}]
  %s1 = inlined_call_operand.vmem [shape: f32[32,16], index: 1, kind: input, shape index: {}]
  %s2 = inlined_call_operand.vmem [shape: f32[16,128], index: 2, kind: input, shape index: {}]
  %s3 = inlined_call_operand.vmem [shape: f32[1,128], index: 3, kind: input, shape index: {}]
  %s4 = inlined_call_operand.vmem [shape: f32[128,128], index: 4, kind: input, shape index: {}]
  %s5 = inlined_call_operand.vmem [shape: f32[1,128], index: 5, kind: input, shape index: {}]
  %s6 = inlined_call_operand.vmem [shape: f32[128,128], index: 6, kind: input, shape index: {}]
  %s7 = inlined_call_operand.vmem [shape: f32[1,128], index: 7, kind: input, shape index: {}]
  %s8 = inlined_call_operand.vmem [shape: f32[128,128], index: 8, kind: input, shape index: {}]
  %s9 = inlined_call_operand.vmem [shape: f32[1,128], index: 9, kind: input, shape index: {}]
  %s10 = inlined_call_operand.hbm [shape: f32[1,128], index: 10, kind: output, shape index: {}]
  %s11 = sld [smem:[#allocation0]]
  $region50: #{my_gnn_forward.1} parent=0
    _
  %s13 = ssub.s32 1, %s11
  %s14 = scalar_select 0, %s13, %s11
  $region1: #{my_gnn_forward.1} parent=0
    #allocation2 [shape = 'u8[512]{0}', space=vmem, size = 0x400, scoped, tag = 'output window, operand 0, single buffered']
    #allocation3 [shape = 's32[1]{0}', space=sflag, size = 0x4, scoped, tag = 'scoped memory for my_gnn_forward.1']
    %15 = vsyncpa [#allocation3], 0
    // Predicated region
    $region2: #{my_gnn_forward.1} parent=1 // pred_check
      _
    $region3: #{my_gnn_forward.1} parent=1 // pred_check_branch
      %17 = sbr.rel (0) target = $region5
    $region4: #{my_gnn_forward.1} parent=1 // pred_region
      _
    $region5: #{my_gnn_forward.1} parent=1 // pred_fallthru
      _
    // Predicated region
    $region6: #{my_gnn_forward.1} parent=1 // pred_check
      _
    $region7: #{my_gnn_forward.1} parent=1 // pred_check_branch
      %19 = sbr.rel (0) target = $region9
    $region8: #{my_gnn_forward.1} parent=1 // pred_region
      _
    $region9: #{my_gnn_forward.1} parent=1 // pred_fallthru
      _
    // Predicated region
    $region10: #{my_gnn_forward.1} parent=1 // pred_check
      _
    $region11: #{my_gnn_forward.1} parent=1 // pred_check_branch
      %21 = sbr.rel (0) target = $region13
    $region12: #{my_gnn_forward.1} parent=1 // pred_region
      _
    $region13: #{my_gnn_forward.1} parent=1 // pred_fallthru
      _
    // Predicated region
    $region14: #{my_gnn_forward.1} parent=1 // pred_check
      _
    $region15: #{my_gnn_forward.1} parent=1 // pred_check_branch
      %23 = sbr.rel (0) target = $region17
    $region16: #{my_gnn_forward.1} parent=1 // pred_region
      _
    $region17: #{my_gnn_forward.1} parent=1 // pred_fallthru
      _
    // Predicated region
    $region18: #{my_gnn_forward.1} parent=1 // pred_check
      _
    $region19: #{my_gnn_forward.1} parent=1 // pred_check_branch
      %25 = sbr.rel (0) target = $region21
    $region20: #{my_gnn_forward.1} parent=1 // pred_region
      _
    $region21: #{my_gnn_forward.1} parent=1 // pred_fallthru
      _
    // Predicated region
    $region22: #{my_gnn_forward.1} parent=1 // pred_check
      _
    $region23: #{my_gnn_forward.1} parent=1 // pred_check_branch
      %27 = sbr.rel (0) target = $region25
    $region24: #{my_gnn_forward.1} parent=1 // pred_region
      _
    $region25: #{my_gnn_forward.1} parent=1 // pred_fallthru
      _
    // Predicated region
    $region26: #{my_gnn_forward.1} parent=1 // pred_check
      _
    $region27: #{my_gnn_forward.1} parent=1 // pred_check_branch
      %29 = sbr.rel (0) target = $region29
    $region28: #{my_gnn_forward.1} parent=1 // pred_region
      _
    $region29: #{my_gnn_forward.1} parent=1 // pred_fallthru
      _
    // Predicated region
    $region30: #{my_gnn_forward.1} parent=1 // pred_check
      _
    $region31: #{my_gnn_forward.1} parent=1 // pred_check_branch
      %31 = sbr.rel (0) target = $region33
    $region32: #{my_gnn_forward.1} parent=1 // pred_region
      _
    $region33: #{my_gnn_forward.1} parent=1 // pred_fallthru
      _
    // Predicated region
    $region34: #{my_gnn_forward.1} parent=1 // pred_check
      _
    $region35: #{my_gnn_forward.1} parent=1 // pred_check_branch
      %33 = sbr.rel (0) target = $region37
    $region36: #{my_gnn_forward.1} parent=1 // pred_region
      _
    $region37: #{my_gnn_forward.1} parent=1 // pred_fallthru
      _
    // Predicated region
    $region38: #{my_gnn_forward.1} parent=1 // pred_check
      _
    $region39: #{my_gnn_forward.1} parent=1 // pred_check_branch
      %35 = sbr.rel (0) target = $region41
    $region40: #{my_gnn_forward.1} parent=1 // pred_region
      _
    $region41: #{my_gnn_forward.1} parent=1 // pred_fallthru
      _
    %v36 = vld [vmem:[%s0] sm:$0xff]
    %v37 = vld [vmem:[%s0 + $0x8] sm:$0xff]
    %v38 = vld [vmem:[%s0 + $0x10] sm:$0xff]
    %v39 = vld [vmem:[%s0 + $0x18] sm:$0xff]
    %v40 = vld [vmem:[%s1] sm:$0xff]
    %v41 = vld [vmem:[%s1 + $0x8] sm:$0xff]
    %v42 = vld [vmem:[%s1 + $0x10] sm:$0xff]
    %v43 = vld [vmem:[%s1 + $0x18] sm:$0xff]
    %vm44 = vcmask 261120
    %v46 = vsel %vm44, %v36, 0
    %v49 = vsel %vm44, %v37, 0
    %v52 = vsel %vm44, %v38, 0
    %v55 = vsel %vm44, %v39, 0
    %57 = vmatprep.subr.mxu0 0.0
    %58 = vmatpush1.msra.mxu0 0.0
    %59 = vmatprep.subr.mxu0 0.0
    %60 = vmatpush1.msra.mxu0 0.0
    %61 = vmatprep.subr.mxu0 0.0
    %62 = vmatpush1.msra.mxu0 0.0
    %63 = vmatprep.subr.mxu0 0.0
    %64 = vmatpush1.msra.mxu0 0.0
    %65 = vmatprep.subr.mxu0 0.0
    %66 = vmatpush1.msra.mxu0 0.0
    %67 = vmatprep.subr.mxu0 0.0
    %68 = vmatpush1.msra.mxu0 0.0
    %69 = vmatprep.subr.mxu0 0.0
    %70 = vmatpush1.msra.mxu0 0.0
    %71 = vmatprep.subr.mxu0 0.0
    %72 = vmatpush1.msra.mxu0 0.0
    %73 = vmatprep.subr.mxu0 0.0
    %74 = vmatpush1.msra.mxu0 0.0
    %75 = vmatprep.subr.mxu0 0.0
    %76 = vmatpush1.msra.mxu0 0.0
    %77 = vmatprep.subr.mxu0 0.0
    %78 = vmatpush1.msra.mxu0 0.0
    %79 = vmatprep.subr.mxu0 0.0
    %80 = vmatpush1.msra.mxu0 0.0
    %81 = vmatprep.subr.mxu0 0.0
    %82 = vmatpush1.msra.mxu0 %v43
    %83 = vmatprep.subr.mxu0 0.0
    %84 = vmatpush1.msra.mxu0 %v42
    %85 = vmatprep.subr.mxu0 0.0
    %86 = vmatpush1.msra.mxu0 %v41
    %87 = vmatprep.subr.mxu0 0.0
    %88 = vmatpush1.msra.mxu0 %v40
    %89 = vmatprep.subr.mxu0 0.0
    %90 = vmatpush2.msra.mxu0 0.0
    %91 = vmatprep.subr.mxu0 0.0
    %92 = vmatpush2.msra.mxu0 0.0
    %93 = vmatprep.subr.mxu0 0.0
    %94 = vmatpush2.msra.mxu0 0.0
    %95 = vmatprep.subr.mxu0 0.0
    %96 = vmatpush2.msra.mxu0 0.0
    %97 = vmatprep.subr.mxu0 0.0
    %98 = vmatpush2.msra.mxu0 0.0
    %99 = vmatprep.subr.mxu0 0.0
    %100 = vmatpush2.msra.mxu0 0.0
    %101 = vmatprep.subr.mxu0 0.0
    %102 = vmatpush2.msra.mxu0 0.0
    %103 = vmatprep.subr.mxu0 0.0
    %104 = vmatpush2.msra.mxu0 0.0
    %105 = vmatprep.subr.mxu0 0.0
    %106 = vmatpush2.msra.mxu0 0.0
    %107 = vmatprep.subr.mxu0 0.0
    %108 = vmatpush2.msra.mxu0 0.0
    %109 = vmatprep.subr.mxu0 0.0
    %110 = vmatpush2.msra.mxu0 0.0
    %111 = vmatprep.subr.mxu0 0.0
    %112 = vmatpush2.msra.mxu0 0.0
    %113 = vmatprep.subr.mxu0 0.0
    %114 = vmatpush2.msra.mxu0 0.0
    %115 = vmatprep.subr.mxu0 0.0
    %116 = vmatpush2.msra.mxu0 0.0
    %117 = vmatprep.subr.mxu0 0.0
    %118 = vmatpush2.msra.mxu0 0.0
    %119 = vmatprep.subr.mxu0 0.0
    %120 = vmatpush2.msra.mxu0 0.0
    %121 = vmatprep.mubr.f32.mxu0 0.0
    %122 = vmatmul.mubr.f32.gmra.mxu0 %v46
    %v123 = vpop.f32.mrf.mxu0
    %v124 = vadd.f32 0.0, %v123
    %v125 = vpop.f32.mrf.mxu0
    %126 = vmatprep.mubr.f32.mxu0 0.0
    %127 = vmatmul.mubr.f32.gmra.mxu0 %v49
    %v128 = vpop.f32.mrf.mxu0
    %v129 = vadd.f32 0.0, %v128
    %v130 = vpop.f32.mrf.mxu0
    %131 = vmatprep.mubr.f32.mxu0 0.0
    %132 = vmatmul.mubr.f32.gmra.mxu0 %v52
    %v133 = vpop.f32.mrf.mxu0
    %v134 = vadd.f32 0.0, %v133
    %v135 = vpop.f32.mrf.mxu0
    %136 = vmatprep.mubr.f32.mxu0 0.0
    %137 = vmatmul.mubr.f32.gmra.mxu0 %v55
    %v138 = vpop.f32.mrf.mxu0
    %v139 = vadd.f32 0.0, %v138
    %v140 = vpop.f32.mrf.mxu0
    %141 = vdwg.mxu0
    %v142 = vld [vmem:[%s2] sm:$0xff]
    %v143 = vld [vmem:[%s2 + $0x8] sm:$0xff]
    %v144 = vld [vmem:[%s3] sm:$0x1]
    %v146 = vlaneseq
    %v147 = vshrl.u32 %v146, 7
    %v148 = vsub.s32 0, %v147
    %v149 = vrot.slane %v144, %v148
    %vm151 = vcmask 130048
    %v153 = vsel %vm151, %v124, 0
    %v156 = vsel %vm151, %v129, 0
    %v159 = vsel %vm151, %v134, 0
    %v162 = vsel %vm151, %v139, 0
    %164 = vmatprep.subr.mxu0 0.0
    %165 = vmatpush1.msra.mxu0 0.0
    %166 = vmatprep.subr.mxu0 0.0
    %167 = vmatpush1.msra.mxu0 0.0
    %168 = vmatprep.subr.mxu0 0.0
    %169 = vmatpush1.msra.mxu0 0.0
    %170 = vmatprep.subr.mxu0 0.0
    %171 = vmatpush1.msra.mxu0 0.0
    %172 = vmatprep.subr.mxu0 0.0
    %173 = vmatpush1.msra.mxu0 0.0
    %174 = vmatprep.subr.mxu0 0.0
    %175 = vmatpush1.msra.mxu0 0.0
    %176 = vmatprep.subr.mxu0 0.0
    %177 = vmatpush1.msra.mxu0 0.0
    %178 = vmatprep.subr.mxu0 0.0
    %179 = vmatpush1.msra.mxu0 0.0
    %180 = vmatprep.subr.mxu0 0.0
    %181 = vmatpush1.msra.mxu0 0.0
    %182 = vmatprep.subr.mxu0 0.0
    %183 = vmatpush1.msra.mxu0 0.0
    %184 = vmatprep.subr.mxu0 0.0
    %185 = vmatpush1.msra.mxu0 0.0
    %186 = vmatprep.subr.mxu0 0.0
    %187 = vmatpush1.msra.mxu0 0.0
    %188 = vmatprep.subr.mxu0 0.0
    %189 = vmatpush1.msra.mxu0 0.0
    %190 = vmatprep.subr.mxu0 0.0
    %191 = vmatpush1.msra.mxu0 0.0
    %192 = vmatprep.subr.mxu0 0.0
    %193 = vmatpush1.msra.mxu0 %v143
    %194 = vmatprep.subr.mxu0 0.0
    %195 = vmatpush1.msra.mxu0 %v142
    %196 = vmatprep.subr.mxu0 0.0
    %197 = vmatpush2.msra.mxu0 0.0
    %198 = vmatprep.subr.mxu0 0.0
    %199 = vmatpush2.msra.mxu0 0.0
    %200 = vmatprep.subr.mxu0 0.0
    %201 = vmatpush2.msra.mxu0 0.0
    %202 = vmatprep.subr.mxu0 0.0
    %203 = vmatpush2.msra.mxu0 0.0
    %204 = vmatprep.subr.mxu0 0.0
    %205 = vmatpush2.msra.mxu0 0.0
    %206 = vmatprep.subr.mxu0 0.0
    %207 = vmatpush2.msra.mxu0 0.0
    %208 = vmatprep.subr.mxu0 0.0
    %209 = vmatpush2.msra.mxu0 0.0
    %210 = vmatprep.subr.mxu0 0.0
    %211 = vmatpush2.msra.mxu0 0.0
    %212 = vmatprep.subr.mxu0 0.0
    %213 = vmatpush2.msra.mxu0 0.0
    %214 = vmatprep.subr.mxu0 0.0
    %215 = vmatpush2.msra.mxu0 0.0
    %216 = vmatprep.subr.mxu0 0.0
    %217 = vmatpush2.msra.mxu0 0.0
    %218 = vmatprep.subr.mxu0 0.0
    %219 = vmatpush2.msra.mxu0 0.0
    %220 = vmatprep.subr.mxu0 0.0
    %221 = vmatpush2.msra.mxu0 0.0
    %222 = vmatprep.subr.mxu0 0.0
    %223 = vmatpush2.msra.mxu0 0.0
    %224 = vmatprep.subr.mxu0 0.0
    %225 = vmatpush2.msra.mxu0 0.0
    %226 = vmatprep.subr.mxu0 0.0
    %227 = vmatpush2.msra.mxu0 0.0
    %228 = vmatprep.mubr.f32.mxu0 0.0
    %229 = vmatmul.mubr.f32.gmra.mxu0 %v153
    %v230 = vpop.f32.mrf.mxu0
    %v231 = vadd.f32 %v149, %v230
    %v232 = vpop.f32.mrf.mxu0
    %233 = vmatprep.mubr.f32.mxu0 0.0
    %234 = vmatmul.mubr.f32.gmra.mxu0 %v156
    %v235 = vpop.f32.mrf.mxu0
    %v236 = vadd.f32 %v149, %v235
    %v237 = vpop.f32.mrf.mxu0
    %238 = vmatprep.mubr.f32.mxu0 0.0
    %239 = vmatmul.mubr.f32.gmra.mxu0 %v159
    %v240 = vpop.f32.mrf.mxu0
    %v241 = vadd.f32 %v149, %v240
    %v242 = vpop.f32.mrf.mxu0
    %243 = vmatprep.mubr.f32.mxu0 0.0
    %244 = vmatmul.mubr.f32.gmra.mxu0 %v162
    %v245 = vpop.f32.mrf.mxu0
    %v246 = vadd.f32 %v149, %v245
    %v247 = vpop.f32.mrf.mxu0
    %248 = vdwg.mxu0
    %v249 = vmax.f32 %v231, 0.0
    %v250 = vmax.f32 %v236, 0.0
    %v251 = vmax.f32 %v241, 0.0
    %v252 = vmax.f32 %v246, 0.0
    %253 = vmatprep.subr.mxu0 0.0
    %254 = vmatpush1.msra.mxu0 0.0
    %255 = vmatprep.subr.mxu0 0.0
    %256 = vmatpush1.msra.mxu0 0.0
    %257 = vmatprep.subr.mxu0 0.0
    %258 = vmatpush1.msra.mxu0 0.0
    %259 = vmatprep.subr.mxu0 0.0
    %260 = vmatpush1.msra.mxu0 0.0
    %261 = vmatprep.subr.mxu0 0.0
    %262 = vmatpush1.msra.mxu0 0.0
    %263 = vmatprep.subr.mxu0 0.0
    %264 = vmatpush1.msra.mxu0 0.0
    %265 = vmatprep.subr.mxu0 0.0
    %266 = vmatpush1.msra.mxu0 0.0
    %267 = vmatprep.subr.mxu0 0.0
    %268 = vmatpush1.msra.mxu0 0.0
    %269 = vmatprep.subr.mxu0 0.0
    %270 = vmatpush1.msra.mxu0 0.0
    %271 = vmatprep.subr.mxu0 0.0
    %272 = vmatpush1.msra.mxu0 0.0
    %273 = vmatprep.subr.mxu0 0.0
    %274 = vmatpush1.msra.mxu0 0.0
    %275 = vmatprep.subr.mxu0 0.0
    %276 = vmatpush1.msra.mxu0 0.0
    %277 = vmatprep.subr.mxu0 0.0
    %278 = vmatpush1.msra.mxu0 %v252
    %279 = vmatprep.subr.mxu0 0.0
    %280 = vmatpush1.msra.mxu0 %v251
    %281 = vmatprep.subr.mxu0 0.0
    %282 = vmatpush1.msra.mxu0 %v250
    %283 = vmatprep.subr.mxu0 0.0
    %284 = vmatpush1.msra.mxu0 %v249
    %285 = vmatprep.subr.mxu0 0.0
    %286 = vmatpush2.msra.mxu0 0.0
    %287 = vmatprep.subr.mxu0 0.0
    %288 = vmatpush2.msra.mxu0 0.0
    %289 = vmatprep.subr.mxu0 0.0
    %290 = vmatpush2.msra.mxu0 0.0
    %291 = vmatprep.subr.mxu0 0.0
    %292 = vmatpush2.msra.mxu0 0.0
    %293 = vmatprep.subr.mxu0 0.0
    %294 = vmatpush2.msra.mxu0 0.0
    %295 = vmatprep.subr.mxu0 0.0
    %296 = vmatpush2.msra.mxu0 0.0
    %297 = vmatprep.subr.mxu0 0.0
    %298 = vmatpush2.msra.mxu0 0.0
    %299 = vmatprep.subr.mxu0 0.0
    %300 = vmatpush2.msra.mxu0 0.0
    %301 = vmatprep.subr.mxu0 0.0
    %302 = vmatpush2.msra.mxu0 0.0
    %303 = vmatprep.subr.mxu0 0.0
    %304 = vmatpush2.msra.mxu0 0.0
    %305 = vmatprep.subr.mxu0 0.0
    %306 = vmatpush2.msra.mxu0 0.0
    %307 = vmatprep.subr.mxu0 0.0
    %308 = vmatpush2.msra.mxu0 0.0
    %309 = vmatprep.subr.mxu0 0.0
    %310 = vmatpush2.msra.mxu0 0.0
    %311 = vmatprep.subr.mxu0 0.0
    %312 = vmatpush2.msra.mxu0 0.0
    %313 = vmatprep.subr.mxu0 0.0
    %314 = vmatpush2.msra.mxu0 0.0
    %315 = vmatprep.subr.mxu0 0.0
    %316 = vmatpush2.msra.mxu0 0.0
    %317 = vmatprep.mubr.f32.mxu0 0.0
    %318 = vmatmul.mubr.f32.gmra.mxu0 %v46
    %v319 = vpop.f32.mrf.mxu0
    %v320 = vadd.f32 0.0, %v319
    %v321 = vpop.f32.mrf.mxu0
    %322 = vmatprep.mubr.f32.mxu0 0.0
    %323 = vmatmul.mubr.f32.gmra.mxu0 %v49
    %v324 = vpop.f32.mrf.mxu0
    %v325 = vadd.f32 0.0, %v324
    %v326 = vpop.f32.mrf.mxu0
    %327 = vmatprep.mubr.f32.mxu0 0.0
    %328 = vmatmul.mubr.f32.gmra.mxu0 %v52
    %v329 = vpop.f32.mrf.mxu0
    %v330 = vadd.f32 0.0, %v329
    %v331 = vpop.f32.mrf.mxu0
    %332 = vmatprep.mubr.f32.mxu0 0.0
    %333 = vmatmul.mubr.f32.gmra.mxu0 %v55
    %v334 = vpop.f32.mrf.mxu0
    %v335 = vadd.f32 0.0, %v334
    %v336 = vpop.f32.mrf.mxu0
    %337 = vdwg.mxu0
    %v338 = vld [vmem:[%s4] sm:$0xff]
    %v339 = vld [vmem:[%s4 + $0x8] sm:$0xff]
    %v340 = vld [vmem:[%s4 + $0x10] sm:$0xff]
    %v341 = vld [vmem:[%s4 + $0x18] sm:$0xff]
    %v342 = vld [vmem:[%s4 + $0x20] sm:$0xff]
    %v343 = vld [vmem:[%s4 + $0x28] sm:$0xff]
    %v344 = vld [vmem:[%s4 + $0x30] sm:$0xff]
    %v345 = vld [vmem:[%s4 + $0x38] sm:$0xff]
    %v346 = vld [vmem:[%s4 + $0x40] sm:$0xff]
    %v347 = vld [vmem:[%s4 + $0x48] sm:$0xff]
    %v348 = vld [vmem:[%s4 + $0x50] sm:$0xff]
    %v349 = vld [vmem:[%s4 + $0x58] sm:$0xff]
    %v350 = vld [vmem:[%s4 + $0x60] sm:$0xff]
    %v351 = vld [vmem:[%s4 + $0x68] sm:$0xff]
    %v352 = vld [vmem:[%s4 + $0x70] sm:$0xff]
    %v353 = vld [vmem:[%s4 + $0x78] sm:$0xff]
    %v354 = vld [vmem:[%s5] sm:$0x1]
    %v356 = vlaneseq
    %v357 = vshrl.u32 %v356, 7
    %v358 = vsub.s32 0, %v357
    %v359 = vrot.slane %v354, %v358
    %361 = vmatprep.subr.mxu0 0.0
    %362 = vmatpush1.msra.mxu0 %v353
    %363 = vmatprep.subr.mxu0 0.0
    %364 = vmatpush1.msra.mxu0 %v352
    %365 = vmatprep.subr.mxu0 0.0
    %366 = vmatpush1.msra.mxu0 %v351
    %367 = vmatprep.subr.mxu0 0.0
    %368 = vmatpush1.msra.mxu0 %v350
    %369 = vmatprep.subr.mxu0 0.0
    %370 = vmatpush1.msra.mxu0 %v349
    %371 = vmatprep.subr.mxu0 0.0
    %372 = vmatpush1.msra.mxu0 %v348
    %373 = vmatprep.subr.mxu0 0.0
    %374 = vmatpush1.msra.mxu0 %v347
    %375 = vmatprep.subr.mxu0 0.0
    %376 = vmatpush1.msra.mxu0 %v346
    %377 = vmatprep.subr.mxu0 0.0
    %378 = vmatpush1.msra.mxu0 %v345
    %379 = vmatprep.subr.mxu0 0.0
    %380 = vmatpush1.msra.mxu0 %v344
    %381 = vmatprep.subr.mxu0 0.0
    %382 = vmatpush1.msra.mxu0 %v343
    %383 = vmatprep.subr.mxu0 0.0
    %384 = vmatpush1.msra.mxu0 %v342
    %385 = vmatprep.subr.mxu0 0.0
    %386 = vmatpush1.msra.mxu0 %v341
    %387 = vmatprep.subr.mxu0 0.0
    %388 = vmatpush1.msra.mxu0 %v340
    %389 = vmatprep.subr.mxu0 0.0
    %390 = vmatpush1.msra.mxu0 %v339
    %391 = vmatprep.subr.mxu0 0.0
    %392 = vmatpush1.msra.mxu0 %v338
    %393 = vmatprep.subr.mxu0 0.0
    %394 = vmatpush2.msra.mxu0 0.0
    %395 = vmatprep.subr.mxu0 0.0
    %396 = vmatpush2.msra.mxu0 0.0
    %397 = vmatprep.subr.mxu0 0.0
    %398 = vmatpush2.msra.mxu0 0.0
    %399 = vmatprep.subr.mxu0 0.0
    %400 = vmatpush2.msra.mxu0 0.0
    %401 = vmatprep.subr.mxu0 0.0
    %402 = vmatpush2.msra.mxu0 0.0
    %403 = vmatprep.subr.mxu0 0.0
    %404 = vmatpush2.msra.mxu0 0.0
    %405 = vmatprep.subr.mxu0 0.0
    %406 = vmatpush2.msra.mxu0 0.0
    %407 = vmatprep.subr.mxu0 0.0
    %408 = vmatpush2.msra.mxu0 0.0
    %409 = vmatprep.subr.mxu0 0.0
    %410 = vmatpush2.msra.mxu0 0.0
    %411 = vmatprep.subr.mxu0 0.0
    %412 = vmatpush2.msra.mxu0 0.0
    %413 = vmatprep.subr.mxu0 0.0
    %414 = vmatpush2.msra.mxu0 0.0
    %415 = vmatprep.subr.mxu0 0.0
    %416 = vmatpush2.msra.mxu0 0.0
    %417 = vmatprep.subr.mxu0 0.0
    %418 = vmatpush2.msra.mxu0 0.0
    %419 = vmatprep.subr.mxu0 0.0
    %420 = vmatpush2.msra.mxu0 0.0
    %421 = vmatprep.subr.mxu0 0.0
    %422 = vmatpush2.msra.mxu0 0.0
    %423 = vmatprep.subr.mxu0 0.0
    %424 = vmatpush2.msra.mxu0 0.0
    %425 = vmatprep.mubr.f32.mxu0 0.0
    %426 = vmatmul.mubr.f32.gmra.mxu0 %v320
    %v427 = vpop.f32.mrf.mxu0
    %v428 = vadd.f32 %v359, %v427
    %v429 = vpop.f32.mrf.mxu0
    %430 = vmatprep.mubr.f32.mxu0 0.0
    %431 = vmatmul.mubr.f32.gmra.mxu0 %v325
    %v432 = vpop.f32.mrf.mxu0
    %v433 = vadd.f32 %v359, %v432
    %v434 = vpop.f32.mrf.mxu0
    %435 = vmatprep.mubr.f32.mxu0 0.0
    %436 = vmatmul.mubr.f32.gmra.mxu0 %v330
    %v437 = vpop.f32.mrf.mxu0
    %v438 = vadd.f32 %v359, %v437
    %v439 = vpop.f32.mrf.mxu0
    %440 = vmatprep.mubr.f32.mxu0 0.0
    %441 = vmatmul.mubr.f32.gmra.mxu0 %v335
    %v442 = vpop.f32.mrf.mxu0
    %v443 = vadd.f32 %v359, %v442
    %v444 = vpop.f32.mrf.mxu0
    %445 = vdwg.mxu0
    %v446 = vmax.f32 %v428, 0.0
    %v447 = vmax.f32 %v433, 0.0
    %v448 = vmax.f32 %v438, 0.0
    %v449 = vmax.f32 %v443, 0.0
    %450 = vmatprep.subr.mxu0 0.0
    %451 = vmatpush1.msra.mxu0 0.0
    %452 = vmatprep.subr.mxu0 0.0
    %453 = vmatpush1.msra.mxu0 0.0
    %454 = vmatprep.subr.mxu0 0.0
    %455 = vmatpush1.msra.mxu0 0.0
    %456 = vmatprep.subr.mxu0 0.0
    %457 = vmatpush1.msra.mxu0 0.0
    %458 = vmatprep.subr.mxu0 0.0
    %459 = vmatpush1.msra.mxu0 0.0
    %460 = vmatprep.subr.mxu0 0.0
    %461 = vmatpush1.msra.mxu0 0.0
    %462 = vmatprep.subr.mxu0 0.0
    %463 = vmatpush1.msra.mxu0 0.0
    %464 = vmatprep.subr.mxu0 0.0
    %465 = vmatpush1.msra.mxu0 0.0
    %466 = vmatprep.subr.mxu0 0.0
    %467 = vmatpush1.msra.mxu0 0.0
    %468 = vmatprep.subr.mxu0 0.0
    %469 = vmatpush1.msra.mxu0 0.0
    %470 = vmatprep.subr.mxu0 0.0
    %471 = vmatpush1.msra.mxu0 0.0
    %472 = vmatprep.subr.mxu0 0.0
    %473 = vmatpush1.msra.mxu0 0.0
    %474 = vmatprep.subr.mxu0 0.0
    %475 = vmatpush1.msra.mxu0 %v449
    %476 = vmatprep.subr.mxu0 0.0
    %477 = vmatpush1.msra.mxu0 %v448
    %478 = vmatprep.subr.mxu0 0.0
    %479 = vmatpush1.msra.mxu0 %v447
    %480 = vmatprep.subr.mxu0 0.0
    %481 = vmatpush1.msra.mxu0 %v446
    %482 = vmatprep.subr.mxu0 0.0
    %483 = vmatpush2.msra.mxu0 0.0
    %484 = vmatprep.subr.mxu0 0.0
    %485 = vmatpush2.msra.mxu0 0.0
    %486 = vmatprep.subr.mxu0 0.0
    %487 = vmatpush2.msra.mxu0 0.0
    %488 = vmatprep.subr.mxu0 0.0
    %489 = vmatpush2.msra.mxu0 0.0
    %490 = vmatprep.subr.mxu0 0.0
    %491 = vmatpush2.msra.mxu0 0.0
    %492 = vmatprep.subr.mxu0 0.0
    %493 = vmatpush2.msra.mxu0 0.0
    %494 = vmatprep.subr.mxu0 0.0
    %495 = vmatpush2.msra.mxu0 0.0
    %496 = vmatprep.subr.mxu0 0.0
    %497 = vmatpush2.msra.mxu0 0.0
    %498 = vmatprep.subr.mxu0 0.0
    %499 = vmatpush2.msra.mxu0 0.0
    %500 = vmatprep.subr.mxu0 0.0
    %501 = vmatpush2.msra.mxu0 0.0
    %502 = vmatprep.subr.mxu0 0.0
    %503 = vmatpush2.msra.mxu0 0.0
    %504 = vmatprep.subr.mxu0 0.0
    %505 = vmatpush2.msra.mxu0 0.0
    %506 = vmatprep.subr.mxu0 0.0
    %507 = vmatpush2.msra.mxu0 0.0
    %508 = vmatprep.subr.mxu0 0.0
    %509 = vmatpush2.msra.mxu0 0.0
    %510 = vmatprep.subr.mxu0 0.0
    %511 = vmatpush2.msra.mxu0 0.0
    %512 = vmatprep.subr.mxu0 0.0
    %513 = vmatpush2.msra.mxu0 0.0
    %514 = vmatprep.mubr.f32.mxu0 0.0
    %515 = vmatmul.mubr.f32.gmra.mxu0 %v46
    %v516 = vpop.f32.mrf.mxu0
    %v517 = vadd.f32 0.0, %v516
    %v518 = vpop.f32.mrf.mxu0
    %519 = vmatprep.mubr.f32.mxu0 0.0
    %520 = vmatmul.mubr.f32.gmra.mxu0 %v49
    %v521 = vpop.f32.mrf.mxu0
    %v522 = vadd.f32 0.0, %v521
    %v523 = vpop.f32.mrf.mxu0
    %524 = vmatprep.mubr.f32.mxu0 0.0
    %525 = vmatmul.mubr.f32.gmra.mxu0 %v52
    %v526 = vpop.f32.mrf.mxu0
    %v527 = vadd.f32 0.0, %v526
    %v528 = vpop.f32.mrf.mxu0
    %529 = vmatprep.mubr.f32.mxu0 0.0
    %530 = vmatmul.mubr.f32.gmra.mxu0 %v55
    %v531 = vpop.f32.mrf.mxu0
    %v532 = vadd.f32 0.0, %v531
    %v533 = vpop.f32.mrf.mxu0
    %534 = vdwg.mxu0
    %v535 = vld [vmem:[%s6] sm:$0xff]
    %v536 = vld [vmem:[%s6 + $0x8] sm:$0xff]
    %v537 = vld [vmem:[%s6 + $0x10] sm:$0xff]
    %v538 = vld [vmem:[%s6 + $0x18] sm:$0xff]
    %v539 = vld [vmem:[%s6 + $0x20] sm:$0xff]
    %v540 = vld [vmem:[%s6 + $0x28] sm:$0xff]
    %v541 = vld [vmem:[%s6 + $0x30] sm:$0xff]
    %v542 = vld [vmem:[%s6 + $0x38] sm:$0xff]
    %v543 = vld [vmem:[%s6 + $0x40] sm:$0xff]
    %v544 = vld [vmem:[%s6 + $0x48] sm:$0xff]
    %v545 = vld [vmem:[%s6 + $0x50] sm:$0xff]
    %v546 = vld [vmem:[%s6 + $0x58] sm:$0xff]
    %v547 = vld [vmem:[%s6 + $0x60] sm:$0xff]
    %v548 = vld [vmem:[%s6 + $0x68] sm:$0xff]
    %v549 = vld [vmem:[%s6 + $0x70] sm:$0xff]
    %v550 = vld [vmem:[%s6 + $0x78] sm:$0xff]
    %v551 = vld [vmem:[%s7] sm:$0x1]
    %v553 = vlaneseq
    %v554 = vshrl.u32 %v553, 7
    %v555 = vsub.s32 0, %v554
    %v556 = vrot.slane %v551, %v555
    %558 = vmatprep.subr.mxu0 0.0
    %559 = vmatpush1.msra.mxu0 %v550
    %560 = vmatprep.subr.mxu0 0.0
    %561 = vmatpush1.msra.mxu0 %v549
    %562 = vmatprep.subr.mxu0 0.0
    %563 = vmatpush1.msra.mxu0 %v548
    %564 = vmatprep.subr.mxu0 0.0
    %565 = vmatpush1.msra.mxu0 %v547
    %566 = vmatprep.subr.mxu0 0.0
    %567 = vmatpush1.msra.mxu0 %v546
    %568 = vmatprep.subr.mxu0 0.0
    %569 = vmatpush1.msra.mxu0 %v545
    %570 = vmatprep.subr.mxu0 0.0
    %571 = vmatpush1.msra.mxu0 %v544
    %572 = vmatprep.subr.mxu0 0.0
    %573 = vmatpush1.msra.mxu0 %v543
    %574 = vmatprep.subr.mxu0 0.0
    %575 = vmatpush1.msra.mxu0 %v542
    %576 = vmatprep.subr.mxu0 0.0
    %577 = vmatpush1.msra.mxu0 %v541
    %578 = vmatprep.subr.mxu0 0.0
    %579 = vmatpush1.msra.mxu0 %v540
    %580 = vmatprep.subr.mxu0 0.0
    %581 = vmatpush1.msra.mxu0 %v539
    %582 = vmatprep.subr.mxu0 0.0
    %583 = vmatpush1.msra.mxu0 %v538
    %584 = vmatprep.subr.mxu0 0.0
    %585 = vmatpush1.msra.mxu0 %v537
    %586 = vmatprep.subr.mxu0 0.0
    %587 = vmatpush1.msra.mxu0 %v536
    %588 = vmatprep.subr.mxu0 0.0
    %589 = vmatpush1.msra.mxu0 %v535
    %590 = vmatprep.subr.mxu0 0.0
    %591 = vmatpush2.msra.mxu0 0.0
    %592 = vmatprep.subr.mxu0 0.0
    %593 = vmatpush2.msra.mxu0 0.0
    %594 = vmatprep.subr.mxu0 0.0
    %595 = vmatpush2.msra.mxu0 0.0
    %596 = vmatprep.subr.mxu0 0.0
    %597 = vmatpush2.msra.mxu0 0.0
    %598 = vmatprep.subr.mxu0 0.0
    %599 = vmatpush2.msra.mxu0 0.0
    %600 = vmatprep.subr.mxu0 0.0
    %601 = vmatpush2.msra.mxu0 0.0
    %602 = vmatprep.subr.mxu0 0.0
    %603 = vmatpush2.msra.mxu0 0.0
    %604 = vmatprep.subr.mxu0 0.0
    %605 = vmatpush2.msra.mxu0 0.0
    %606 = vmatprep.subr.mxu0 0.0
    %607 = vmatpush2.msra.mxu0 0.0
    %608 = vmatprep.subr.mxu0 0.0
    %609 = vmatpush2.msra.mxu0 0.0
    %610 = vmatprep.subr.mxu0 0.0
    %611 = vmatpush2.msra.mxu0 0.0
    %612 = vmatprep.subr.mxu0 0.0
    %613 = vmatpush2.msra.mxu0 0.0
    %614 = vmatprep.subr.mxu0 0.0
    %615 = vmatpush2.msra.mxu0 0.0
    %616 = vmatprep.subr.mxu0 0.0
    %617 = vmatpush2.msra.mxu0 0.0
    %618 = vmatprep.subr.mxu0 0.0
    %619 = vmatpush2.msra.mxu0 0.0
    %620 = vmatprep.subr.mxu0 0.0
    %621 = vmatpush2.msra.mxu0 0.0
    %622 = vmatprep.mubr.f32.mxu0 0.0
    %623 = vmatmul.mubr.f32.gmra.mxu0 %v517
    %v624 = vpop.f32.mrf.mxu0
    %v625 = vadd.f32 %v556, %v624
    %v626 = vpop.f32.mrf.mxu0
    %627 = vmatprep.mubr.f32.mxu0 0.0
    %628 = vmatmul.mubr.f32.gmra.mxu0 %v522
    %v629 = vpop.f32.mrf.mxu0
    %v630 = vadd.f32 %v556, %v629
    %v631 = vpop.f32.mrf.mxu0
    %632 = vmatprep.mubr.f32.mxu0 0.0
    %633 = vmatmul.mubr.f32.gmra.mxu0 %v527
    %v634 = vpop.f32.mrf.mxu0
    %v635 = vadd.f32 %v556, %v634
    %v636 = vpop.f32.mrf.mxu0
    %637 = vmatprep.mubr.f32.mxu0 0.0
    %638 = vmatmul.mubr.f32.gmra.mxu0 %v532
    %v639 = vpop.f32.mrf.mxu0
    %v640 = vadd.f32 %v556, %v639
    %v641 = vpop.f32.mrf.mxu0
    %642 = vdwg.mxu0
    %v643 = vmax.f32 %v625, 0.0
    %v644 = vmax.f32 %v630, 0.0
    %v645 = vmax.f32 %v635, 0.0
    %v646 = vmax.f32 %v640, 0.0
    %v647 = vmax.f32 %v643, %v644
    %v648 = vmax.f32 %v645, %v646
    %v649 = vmax.f32 %v647, %v648
    %v650 = vrot.slane %v649, 4
    %v651 = vmax.f32 %v649, %v650
    %v652 = vrot.slane %v651, 2
    %v653 = vmax.f32 %v651, %v652
    %v654 = vrot.slane %v653, 1
    %v655 = vmax.f32 %v653, %v654
    %v656 = vld [vmem:[%s8] sm:$0xff]
    %v657 = vld [vmem:[%s8 + $0x8] sm:$0xff]
    %v658 = vld [vmem:[%s8 + $0x10] sm:$0xff]
    %v659 = vld [vmem:[%s8 + $0x18] sm:$0xff]
    %v660 = vld [vmem:[%s8 + $0x20] sm:$0xff]
    %v661 = vld [vmem:[%s8 + $0x28] sm:$0xff]
    %v662 = vld [vmem:[%s8 + $0x30] sm:$0xff]
    %v663 = vld [vmem:[%s8 + $0x38] sm:$0xff]
    %v664 = vld [vmem:[%s8 + $0x40] sm:$0xff]
    %v665 = vld [vmem:[%s8 + $0x48] sm:$0xff]
    %v666 = vld [vmem:[%s8 + $0x50] sm:$0xff]
    %v667 = vld [vmem:[%s8 + $0x58] sm:$0xff]
    %v668 = vld [vmem:[%s8 + $0x60] sm:$0xff]
    %v669 = vld [vmem:[%s8 + $0x68] sm:$0xff]
    %v670 = vld [vmem:[%s8 + $0x70] sm:$0xff]
    %v671 = vld [vmem:[%s8 + $0x78] sm:$0xff]
    %v672 = vld [vmem:[%s9] sm:$0x1]
    %673 = vmatprep.subr.mxu0 0.0
    %674 = vmatpush1.msra.mxu0 %v671
    %675 = vmatprep.subr.mxu0 0.0
    %676 = vmatpush1.msra.mxu0 %v670
    %677 = vmatprep.subr.mxu0 0.0
    %678 = vmatpush1.msra.mxu0 %v669
    %679 = vmatprep.subr.mxu0 0.0
    %680 = vmatpush1.msra.mxu0 %v668
    %681 = vmatprep.subr.mxu0 0.0
    %682 = vmatpush1.msra.mxu0 %v667
    %683 = vmatprep.subr.mxu0 0.0
    %684 = vmatpush1.msra.mxu0 %v666
    %685 = vmatprep.subr.mxu0 0.0
    %686 = vmatpush1.msra.mxu0 %v665
    %687 = vmatprep.subr.mxu0 0.0
    %688 = vmatpush1.msra.mxu0 %v664
    %689 = vmatprep.subr.mxu0 0.0
    %690 = vmatpush1.msra.mxu0 %v663
    %691 = vmatprep.subr.mxu0 0.0
    %692 = vmatpush1.msra.mxu0 %v662
    %693 = vmatprep.subr.mxu0 0.0
    %694 = vmatpush1.msra.mxu0 %v661
    %695 = vmatprep.subr.mxu0 0.0
    %696 = vmatpush1.msra.mxu0 %v660
    %697 = vmatprep.subr.mxu0 0.0
    %698 = vmatpush1.msra.mxu0 %v659
    %699 = vmatprep.subr.mxu0 0.0
    %700 = vmatpush1.msra.mxu0 %v658
    %701 = vmatprep.subr.mxu0 0.0
    %702 = vmatpush1.msra.mxu0 %v657
    %703 = vmatprep.subr.mxu0 0.0
    %704 = vmatpush1.msra.mxu0 %v656
    %705 = vmatprep.subr.mxu0 0.0
    %706 = vmatpush2.msra.mxu0 0.0
    %707 = vmatprep.subr.mxu0 0.0
    %708 = vmatpush2.msra.mxu0 0.0
    %709 = vmatprep.subr.mxu0 0.0
    %710 = vmatpush2.msra.mxu0 0.0
    %711 = vmatprep.subr.mxu0 0.0
    %712 = vmatpush2.msra.mxu0 0.0
    %713 = vmatprep.subr.mxu0 0.0
    %714 = vmatpush2.msra.mxu0 0.0
    %715 = vmatprep.subr.mxu0 0.0
    %716 = vmatpush2.msra.mxu0 0.0
    %717 = vmatprep.subr.mxu0 0.0
    %718 = vmatpush2.msra.mxu0 0.0
    %719 = vmatprep.subr.mxu0 0.0
    %720 = vmatpush2.msra.mxu0 0.0
    %721 = vmatprep.subr.mxu0 0.0
    %722 = vmatpush2.msra.mxu0 0.0
    %723 = vmatprep.subr.mxu0 0.0
    %724 = vmatpush2.msra.mxu0 0.0
    %725 = vmatprep.subr.mxu0 0.0
    %726 = vmatpush2.msra.mxu0 0.0
    %727 = vmatprep.subr.mxu0 0.0
    %728 = vmatpush2.msra.mxu0 0.0
    %729 = vmatprep.subr.mxu0 0.0
    %730 = vmatpush2.msra.mxu0 0.0
    %731 = vmatprep.subr.mxu0 0.0
    %732 = vmatpush2.msra.mxu0 0.0
    %733 = vmatprep.subr.mxu0 0.0
    %734 = vmatpush2.msra.mxu0 0.0
    %735 = vmatprep.subr.mxu0 0.0
    %736 = vmatpush2.msra.mxu0 0.0
    %737 = vmatprep.mubr.f32.mxu0 0.0
    %738 = vmatmul.mubr.f32.gmra.mxu0 %v655
    %v739 = vpop.f32.mrf.mxu0
    %v740 = vadd.f32 %v672, %v739
    %v741 = vpop.f32.mrf.mxu0
    %742 = vdwg.mxu0
    %743 = vst [vmem:[#allocation2] sm:$0x1] %v740
    // Predicated region
    $region42: #{my_gnn_forward.1} parent=1 // pred_check
      _
    $region43: #{my_gnn_forward.1} parent=1 // pred_check_branch
      %745 = sbr.rel (0) target = $region45
    $region44: #{my_gnn_forward.1} parent=1 // pred_region
      %s747 = ssub.s32 16, 16
      %748 = vsyncadd [#allocation3], %s747
      %s750 = sshll.u32 [#allocation2], 4
      %s751 = int_to_ptr.vmem [resolvable:$true] %s750
      %753 = dma.vmem_to_hbm [thread:$0]  %s751, 16, %s10, [#allocation3]
    $region45: #{my_gnn_forward.1} parent=1 // pred_fallthru
      _
    // Predicated region
    $region46: #{my_gnn_forward.1} parent=1 // pred_check
      _
    $region47: #{my_gnn_forward.1} parent=1 // pred_check_branch
      %755 = sbr.rel (0) target = $region49
    $region48: #{my_gnn_forward.1} parent=1 // pred_region
      %756 = dma.done [#allocation3], 16
    $region49: #{my_gnn_forward.1} parent=1 // pred_fallthru
      _
    %757 = vsyncpa [#allocation3], 1

</llo_original>
